<compile_context>
chip_gen: v7x
topology: tpu7x:2x2x1
jax: 0.10.0
libtpu: 0.0.40
codegen_flags: <defaults>
</compile_context>

<pallas_src>
import functools

import jax
import jax.numpy as jnp
from jax import lax
from jax.experimental import pallas as pl
from jax.experimental.pallas import tpu as pltpu


def _round_up(x, m):
    return ((x + m - 1) // m) * m


def _maybe_pad_to_lanes(x):
    """Pad a trailing dim to a multiple of 128 only when the extra HBM writeback
    is <= 12.5% (lane-dense vst without blowing up output bytes)."""
    p = _round_up(x, 128)
    return p if (p - x) * 8 <= x else x


def _vmem_capacity_bytes():
    """Per-core VMEM capacity; conservative fallback (v7x per-TC) if unavailable."""
    try:
        return int(pltpu.get_tpu_info().vmem_capacity_bytes)
    except Exception:
        return 64 * 1024 * 1024


def _pick_q_tile(lq, lk_pad, d, dv_pad, in_bytes, out_bytes, budget_bytes):
    """Pick the largest Lq tile whose pipelined footprint fits `budget_bytes`.

    Accounting:
      * k^T / v blocks are VMEM-resident per batch (double-buffered by the pipeline)
        at the *input* itemsize.
      * q / out / attn / log_attn blocks are double-buffered; output blocks use the
        *output* itemsize.
      * the in-kernel (TQ, Lk) score temporaries are f32 (4 B) regardless of input
        dtype (~4 live values worst case).
    Returns (tq, lq_padded). Raises if nothing fits (Lk too large for this design).
    """
    lq8 = _round_up(lq, 8)
    cands = [lq8] + [t for t in (1024, 512, 256, 128, 64, 32, 16, 8) if t < lq8]
    kv_resident = 2 * (d * lk_pad + lk_pad * dv_pad) * in_bytes
    for tq in cands:
        lq_pad = _round_up(lq, tq)
        if tq != lq8 and (lq_pad - lq) * 8 > lq_pad:
            continue  # > 12.5% wasted rows on the dominant (Lq, Lk) writeback
        per_step = (2 * tq * d * in_bytes            # q block (double-buffered)
                    + 2 * tq * dv_pad * out_bytes    # out block
                    + 4 * tq * lk_pad * out_bytes    # attn + log_attn blocks
                    + 4 * tq * lk_pad * 4)           # live f32 (TQ, Lk) temporaries
        if kv_resident + per_step <= budget_bytes:
            return tq, lq_pad
    # TODO(synk): add an Lk-tiled two-pass path (pass 1: row max/sum streaming k;
    # pass 2: stream k/v again to emit attn/log_attn tiles and accumulate out) so
    # very long key sequences fit VMEM; until then fail loudly instead of OOMing.
    raise ValueError(
        f"ScaledDotProductAttention Pallas kernel: resident k/v "
        f"({kv_resident / 2**20:.1f} MiB) plus minimum per-step blocks exceed the "
        f"VMEM budget ({budget_bytes / 2**20:.1f} MiB); Lk={lk_pad} is too large "
        f"for the un-tiled key path.")


def _sdpa_kernel(q_ref, kT_ref, v_ref, out_ref, attn_ref, logattn_ref, *,
                 inv_temperature, lk_real, lk_padded, use_bf16_matmul):
    # blocks (batch dim squeezed): q (TQ, D), kT (D, Lkp), v (Lkp, Dvp)
    q = q_ref[...] * inv_temperature          # fold 1/T into the small q tile
    kT = kT_ref[...]
    v = v_ref[...]
    if use_bf16_matmul:
        q = q.astype(jnp.bfloat16)
        kT = kT.astype(jnp.bfloat16)
        v = v.astype(jnp.bfloat16)

    # scores = (q/T) @ k^T : canonical (M,K)@(K,N) MXU matmul, f32 accumulate.
    scores = jnp.dot(q, kT, preferred_element_type=jnp.float32)   # (TQ, Lkp)

    if lk_padded != lk_real:                  # static branch: mask padded key cols
        col = lax.broadcasted_iota(jnp.int32, scores.shape, 1)
        scores = jnp.where(col < lk_real, scores, -1e30)

    # numerically-stable softmax / log_softmax along the key axis (torch dim=2)
    m = jnp.max(scores, axis=-1, keepdims=True)
    shifted = scores - m
    e = jnp.exp(shifted)
    s = jnp.sum(e, axis=-1, keepdims=True)

    # store attn / log_attn before the P@V matmul so the (TQ, Lk) temporaries
    # are dead during the second matmul (less spill / scratch pressure).
    logattn_ref[...] = (shifted - jnp.log(s)).astype(logattn_ref.dtype)
    attn = e * pl.reciprocal(s, approx=True)  # EUP reciprocal, off the VPU path
    attn_ref[...] = attn.astype(attn_ref.dtype)

    # dropout(p=0.0) is identity
    out = jnp.dot(attn.astype(v.dtype), v, preferred_element_type=jnp.float32)
    out_ref[...] = out.astype(out_ref.dtype)


def scaled_dot_product_attention(q, k, v, temperature, *, use_bf16_matmul=False):
    """Pallas TPU forward of ScaledDotProductAttention.

    q: (B, Lq, D), k: (B, Lk, D), v: (B, Lk, Dv)
    returns (output (B,Lq,Dv), attn (B,Lq,Lk), log_attn (B,Lq,Lk)), all in q.dtype.
    """
    B, Lq, D = q.shape
    Bk, Lk, Dk = k.shape
    Bv, Lkv, Dv = v.shape
    assert D == Dk and Bk == B and Bv == B and Lkv == Lk

    out_dtype = q.dtype                       # torch keeps the input dtype throughout
    in_bytes = jnp.dtype(q.dtype).itemsize
    out_bytes = jnp.dtype(out_dtype).itemsize

    # lane-dense padding (only when cheap); padded key columns are masked in-kernel.
    lk_pad = _maybe_pad_to_lanes(Lk)
    dv_pad = _maybe_pad_to_lanes(Dv)

    vmem_cap = _vmem_capacity_bytes()
    budget_bytes = (vmem_cap * 5) // 8        # ~80 MiB on 128 MiB chips, ~40 on v7x
    vmem_limit = (vmem_cap * 7) // 8          # ~112 MiB / ~56 MiB

    tq, lq_pad = _pick_q_tile(Lq, lk_pad, D, dv_pad, in_bytes, out_bytes,
                              budget_bytes)
    n_q_tiles = lq_pad // tq

    qp = q if lq_pad == Lq else jnp.pad(q, ((0, 0), (0, lq_pad - Lq), (0, 0)))
    kp = k if lk_pad == Lk else jnp.pad(k, ((0, 0), (0, lk_pad - Lk), (0, 0)))
    vp = v
    if lk_pad != Lk or dv_pad != Dv:
        vp = jnp.pad(v, ((0, 0), (0, lk_pad - Lk), (0, dv_pad - Dv)))
    # Pre-transpose k once per batch in HBM -> canonical (K, N) RHS in the kernel,
    # no per-grid-step XLU transpose (amortized over all Lq tiles).
    kT = jnp.swapaxes(kp, 1, 2)               # (B, D, lk_pad)

    kernel = functools.partial(
        _sdpa_kernel,
        inv_temperature=1.0 / float(temperature),
        lk_real=Lk, lk_padded=lk_pad,
        use_bf16_matmul=use_bf16_matmul)

    out_shapes = (
        jax.ShapeDtypeStruct((B, lq_pad, dv_pad), out_dtype),
        jax.ShapeDtypeStruct((B, lq_pad, lk_pad), out_dtype),
        jax.ShapeDtypeStruct((B, lq_pad, lk_pad), out_dtype),
    )

    grid_spec = pltpu.PrefetchScalarGridSpec(
        num_scalar_prefetch=0,
        grid=(B, n_q_tiles),
        in_specs=[
            # batch dim squeezed out of the kernel refs (block dim = None)
            pl.BlockSpec((None, tq, D), lambda b, i: (b, i, 0)),
            # k^T / v: same block for every Lq step -> VMEM-resident per batch.
            # TODO(synk): on v7x with very large Lk*(D+Dv), single-buffer these
            # (pipeline_mode=pl.Buffered(1)) and reinvest the saved VMEM in TQ.
            pl.BlockSpec((None, D, lk_pad), lambda b, i: (b, 0, 0)),
            pl.BlockSpec((None, lk_pad, dv_pad), lambda b, i: (b, 0, 0)),
        ],
        out_specs=[
            pl.BlockSpec((None, tq, dv_pad), lambda b, i: (b, i, 0)),
            pl.BlockSpec((None, tq, lk_pad), lambda b, i: (b, i, 0)),
            pl.BlockSpec((None, tq, lk_pad), lambda b, i: (b, i, 0)),
        ],
    )

    out, attn, log_attn = pl.pallas_call(
        kernel,
        out_shape=out_shapes,
        grid_spec=grid_spec,
        compiler_params=pltpu.CompilerParams(
            dimension_semantics=("parallel", "parallel"),
            vmem_limit_bytes=int(vmem_limit),
        ),
    )(qp, kT, vp)

    # slice away any padding
    if lq_pad != Lq or dv_pad != Dv:
        out = out[:, :Lq, :Dv]
    if lq_pad != Lq or lk_pad != Lk:
        attn = attn[:, :Lq, :Lk]
        log_attn = log_attn[:, :Lq, :Lk]
    return out, attn, log_attn


def _reference(q, k, v, temperature):
    hp = jax.lax.Precision.HIGHEST
    attn = jnp.einsum("bqd,bkd->bqk", q, k, precision=hp) / temperature
    m = jnp.max(attn, axis=2, keepdims=True)
    e = jnp.exp(attn - m)
    s = jnp.sum(e, axis=2, keepdims=True)
    p = e / s
    log_p = (attn - m) - jnp.log(s)
    out = jnp.einsum("bqk,bkd->bqd", p, v, precision=hp)
    return out, p, log_p


if __name__ == "__main__":
    key = jax.random.PRNGKey(0)
    kq, kk, kv = jax.random.split(key, 3)

    B, Lq, Lk, D, Dv = 2, 8, 8, 32, 32
    temperature = float(D) ** 0.5

    q = jax.random.normal(kq, (B, Lq, D), dtype=jnp.float32)
    k = jax.random.normal(kk, (B, Lk, D), dtype=jnp.float32)
    v = jax.random.normal(kv, (B, Lk, Dv), dtype=jnp.float32)

    out, attn, log_attn = scaled_dot_product_attention(q, k, v, temperature)
    jax.block_until_ready((out, attn, log_attn))

    ref_out, ref_attn, ref_log = _reference(q, k, v, temperature)
    # attn / out use the EUP approx reciprocal -> slightly looser tolerance
    assert jnp.allclose(out, ref_out, atol=2e-3, rtol=2e-3)
    assert jnp.allclose(attn, ref_attn, atol=2e-3, rtol=2e-3)
    assert jnp.allclose(log_attn, ref_log, atol=1e-5, rtol=1e-5)

    print("KERNEL_OK")
</pallas_src>

<mosaic_0001>
module attributes {stable_mosaic.version = 11 : i64} {
  func.func @_sdpa_kernel(%arg0: i32, %arg1: i32, %arg2: memref<1x8x32xf32, #tpu.memory_space<vmem>>, %arg3: memref<1x32x8xf32, #tpu.memory_space<vmem>>, %arg4: memref<1x8x32xf32, #tpu.memory_space<vmem>>, %arg5: memref<1x8x32xf32, #tpu.memory_space<vmem>>, %arg6: memref<1x8x8xf32, #tpu.memory_space<vmem>>, %arg7: memref<1x8x8xf32, #tpu.memory_space<vmem>>) attributes {dimension_semantics = [#tpu.dimension_semantics<parallel>, #tpu.dimension_semantics<parallel>], iteration_bounds = array<i64: 2, 1>, scalar_prefetch = 0 : i64, scratch_operands = 0 : i64, tpu.core_type = #tpu.core_type<tc>, window_params = [{transform_indices = @transform_0, window_bounds = array<i64: 1, 8, 32>}, {transform_indices = @transform_1, window_bounds = array<i64: 1, 32, 8>}, {transform_indices = @transform_2, window_bounds = array<i64: 1, 8, 32>}, {transform_indices = @transform_3, window_bounds = array<i64: 1, 8, 32>}, {transform_indices = @transform_4, window_bounds = array<i64: 1, 8, 8>}, {transform_indices = @transform_5, window_bounds = array<i64: 1, 8, 8>}]} {
    %c0 = arith.constant 0 : index
    %c0_0 = arith.constant 0 : index
    %c0_1 = arith.constant 0 : index
    %0 = vector.load %arg2[%c0, %c0_0, %c0_1] : memref<1x8x32xf32, #tpu.memory_space<vmem>>, vector<1x8x32xf32>
    %1 = vector.shape_cast %0 : vector<1x8x32xf32> to vector<8x32xf32>
    %cst = arith.constant 0.176776692 : f32
    %2 = vector.broadcast %cst : f32 to vector<8x32xf32>
    %3 = arith.mulf %1, %2 : vector<8x32xf32>
    %c0_2 = arith.constant 0 : index
    %c0_3 = arith.constant 0 : index
    %c0_4 = arith.constant 0 : index
    %4 = vector.load %arg3[%c0_2, %c0_3, %c0_4] : memref<1x32x8xf32, #tpu.memory_space<vmem>>, vector<1x32x8xf32>
    %5 = vector.shape_cast %4 : vector<1x32x8xf32> to vector<32x8xf32>
    %c0_5 = arith.constant 0 : index
    %c0_6 = arith.constant 0 : index
    %c0_7 = arith.constant 0 : index
    %6 = vector.load %arg4[%c0_5, %c0_6, %c0_7] : memref<1x8x32xf32, #tpu.memory_space<vmem>>, vector<1x8x32xf32>
    %7 = vector.shape_cast %6 : vector<1x8x32xf32> to vector<8x32xf32>
    %cst_8 = arith.constant dense<0.000000e+00> : vector<8x8xf32>
    %8 = tpu.matmul %3, %5, %cst_8 {dimension_numbers = #tpu.dot_dimension_numbers<[1], [0], [0], [1], [0, 0, 1, 1], [], []>} : vector<8x32xf32>, vector<32x8xf32>, vector<8x8xf32> -> vector<8x8xf32>
    %cst_9 = arith.constant dense<0xFF800000> : vector<8xf32>
    %9 = vector.multi_reduction <maximumf>, %8, %cst_9 [1] : vector<8x8xf32> to vector<8xf32>
    %10 = vector.shape_cast %9 : vector<8xf32> to vector<8x1xf32>
    %11 = vector.broadcast %10 : vector<8x1xf32> to vector<8x8xf32>
    %12 = arith.subf %8, %11 : vector<8x8xf32>
    %13 = math.exp %12 : vector<8x8xf32>
    %cst_10 = arith.constant dense<0.000000e+00> : vector<8xf32>
    %14 = vector.multi_reduction <add>, %13, %cst_10 [1] : vector<8x8xf32> to vector<8xf32>
    %15 = vector.shape_cast %14 : vector<8xf32> to vector<8x1xf32>
    %16 = math.log %15 : vector<8x1xf32>
    %17 = vector.broadcast %16 : vector<8x1xf32> to vector<8x8xf32>
    %18 = arith.subf %12, %17 : vector<8x8xf32>
    %c0_11 = arith.constant 0 : index
    %c0_12 = arith.constant 0 : index
    %c0_13 = arith.constant 0 : index
    %19 = vector.load %arg7[%c0_11, %c0_12, %c0_13] : memref<1x8x8xf32, #tpu.memory_space<vmem>>, vector<1x8x8xf32>
    %20 = vector.shape_cast %19 : vector<1x8x8xf32> to vector<8x8xf32>
    %21 = vector.shape_cast %18 : vector<8x8xf32> to vector<1x8x8xf32>
    tpu.vector_store %arg7[%c0_11, %c0_12, %c0_13], %21 {strides = array<i32>} : memref<1x8x8xf32, #tpu.memory_space<vmem>>, vector<1x8x8xf32>,
    %22 = tpu.reciprocal %15 {approx = true} : vector<8x1xf32> -> vector<8x1xf32>
    %23 = vector.broadcast %22 : vector<8x1xf32> to vector<8x8xf32>
    %24 = arith.mulf %13, %23 : vector<8x8xf32>
    %c0_14 = arith.constant 0 : index
    %c0_15 = arith.constant 0 : index
    %c0_16 = arith.constant 0 : index
    %25 = vector.load %arg6[%c0_14, %c0_15, %c0_16] : memref<1x8x8xf32, #tpu.memory_space<vmem>>, vector<1x8x8xf32>
    %26 = vector.shape_cast %25 : vector<1x8x8xf32> to vector<8x8xf32>
    %27 = vector.shape_cast %24 : vector<8x8xf32> to vector<1x8x8xf32>
    tpu.vector_store %arg6[%c0_14, %c0_15, %c0_16], %27 {strides = array<i32>} : memref<1x8x8xf32, #tpu.memory_space<vmem>>, vector<1x8x8xf32>,
    %cst_17 = arith.constant dense<0.000000e+00> : vector<8x32xf32>
    %28 = tpu.matmul %24, %7, %cst_17 {dimension_numbers = #tpu.dot_dimension_numbers<[1], [0], [0], [1], [0, 0, 1, 1], [], []>} : vector<8x8xf32>, vector<8x32xf32>, vector<8x32xf32> -> vector<8x32xf32>
    %c0_18 = arith.constant 0 : index
    %c0_19 = arith.constant 0 : index
    %c0_20 = arith.constant 0 : index
    %29 = vector.load %arg5[%c0_18, %c0_19, %c0_20] : memref<1x8x32xf32, #tpu.memory_space<vmem>>, vector<1x8x32xf32>
    %30 = vector.shape_cast %29 : vector<1x8x32xf32> to vector<8x32xf32>
    %31 = vector.shape_cast %28 : vector<8x32xf32> to vector<1x8x32xf32>
    tpu.vector_store %arg5[%c0_18, %c0_19, %c0_20], %31 {strides = array<i32>} : memref<1x8x32xf32, #tpu.memory_space<vmem>>, vector<1x8x32xf32>,
    return
  }
  func.func @transform_0(%arg0: i32, %arg1: i32) -> (i32, i32, i32) {
    %c0_i32 = arith.constant 0 : i32
    %c0_i32_0 = arith.constant 0 : i32
    return %arg0, %arg1, %c0_i32 : i32, i32, i32
  }
  func.func @transform_1(%arg0: i32, %arg1: i32) -> (i32, i32, i32) {
    %c0_i32 = arith.constant 0 : i32
    %c0_i32_0 = arith.constant 0 : i32
    %c0_i32_1 = arith.constant 0 : i32
    return %arg0, %c0_i32, %c0_i32_0 : i32, i32, i32
  }
  func.func @transform_2(%arg0: i32, %arg1: i32) -> (i32, i32, i32) {
    %c0_i32 = arith.constant 0 : i32
    %c0_i32_0 = arith.constant 0 : i32
    %c0_i32_1 = arith.constant 0 : i32
    return %arg0, %c0_i32, %c0_i32_0 : i32, i32, i32
  }
  func.func @transform_3(%arg0: i32, %arg1: i32) -> (i32, i32, i32) {
    %c0_i32 = arith.constant 0 : i32
    %c0_i32_0 = arith.constant 0 : i32
    return %arg0, %arg1, %c0_i32 : i32, i32, i32
  }
  func.func @transform_4(%arg0: i32, %arg1: i32) -> (i32, i32, i32) {
    %c0_i32 = arith.constant 0 : i32
    %c0_i32_0 = arith.constant 0 : i32
    return %arg0, %arg1, %c0_i32 : i32, i32, i32
  }
  func.func @transform_5(%arg0: i32, %arg1: i32) -> (i32, i32, i32) {
    %c0_i32 = arith.constant 0 : i32
    %c0_i32_0 = arith.constant 0 : i32
    return %arg0, %arg1, %c0_i32 : i32, i32, i32
  }
}

</mosaic_0001>

<llo_original>
// kernel: tpu_custom_call.1
$region0: #{tpu_custom_call.1}
  #allocation0 [shape = 'u32[]', space=smem, size = 0x4, offset = 0x4, fixed_abs, tag = 'smem constant byte address 0x4 - core index']
  #allocation1 [shape = 'u32[144,128]{1,0:T(1,128)}', space=vmem, size = 0x12000, scoped, tag = 'internal scratch']
  %s0 = inlined_call_operand.vmem [shape: f32[2,8,32], index: 0, kind: input, shape index: {}]
  %s1 = inlined_call_operand.vmem [shape: f32[2,32,8], index: 1, kind: input, shape index: {}]
  %s2 = inlined_call_operand.vmem [shape: f32[2,8,32], index: 2, kind: input, shape index: {}]
  %s3 = inlined_call_operand.hbm [shape: f32[2,8,32], index: 3, kind: output, shape index: {0}]
  %s4 = inlined_call_operand.hbm [shape: f32[2,8,8], index: 4, kind: output, shape index: {1}]
  %s5 = inlined_call_operand.hbm [shape: f32[2,8,8], index: 5, kind: output, shape index: {2}]
  %6 = xla_tuple %s3, %s4, %s5
  %s7 = sld [smem:[#allocation0]]
  $region61: #{tpu_custom_call.1} parent=0
    _
  %s9 = ssub.s32 1, %s7
  %s10 = scalar_select 0, %s9, %s7
  $region1: #{tpu_custom_call.1} parent=0
    #allocation2 [shape = 'u8[8192]{0}', space=vmem, size = 0x2000, scoped, tag = 'output window, operand 0']
    #allocation3 [shape = 's32[2]{0}', space=sflag, size = 0x8, scoped, tag = 'scoped memory for tpu_custom_call.1']
    #allocation4 [shape = 'u8[8192]{0}', space=vmem, size = 0x2000, scoped, tag = 'output window, operand 1']
    #allocation5 [shape = 's32[2]{0}', space=sflag, size = 0x8, scoped, tag = 'scoped memory for tpu_custom_call.1']
    #allocation6 [shape = 'u8[8192]{0}', space=vmem, size = 0x2000, scoped, tag = 'output window, operand 2']
    %11 = vsyncpa [#allocation3], 0
    %s12 = scalar_lea.sflag [#allocation3], 1
    %13 = vsyncpa %s12, 0
    %14 = vsyncpa [#allocation5], 0
    %s15 = scalar_lea.sflag [#allocation5], 1
    %16 = vsyncpa %s15, 0
    loop: start=0, step=1, limit=4
    $region2: #{tpu_custom_call.1} parent=1 // loop_pre_header
      _
    $region3: #{tpu_custom_call.1} parent=1 // loop_header
      %s18 = sphi 0, %s22
      %p19 = scmp.ge.s32.totalorder %s18, 4
      %s25 = sphi 0, %s37
      %s26 = sphi 0, %s33
      %s27 = sphi 0, %s25
      %s28 = sphi 0, %s26
      %s29 = sphi 0, %s27
      %s30 = sphi 0, %s28
      %s42 = sphi 0, %s44
      %s45 = sphi 0, %s42
      %s46 = sphi 0, %s45
      %s62 = sphi 0, %s46
      %s68 = sphi 0, %s70
      %s71 = sphi 0, %s68
      %s72 = sphi 0, %s71
      %s88 = sphi 0, %s72
      %s94 = sphi 0, %s96
      %s97 = sphi 0, %s94
      %s98 = sphi 0, %s97
      %s114 = sphi 0, %s98
      %s122 = sphi 0, %s124
      %s125 = sphi 0, %s122
      %s126 = sphi 0, %s125
      %s142 = sphi 0, %s126
      %s150 = sphi 0, %s152
      %s153 = sphi 0, %s150
      %s154 = sphi 0, %s153
      %s170 = sphi 0, %s154
      %s178 = sphi 0, %s180
      %s181 = sphi 0, %s178
      %s182 = sphi 0, %s181
      %s198 = sphi 0, %s182
    $region4: #{tpu_custom_call.1} parent=1 // loop_header_branch
      %21 = sbr.rel (%p19) target = $region8
    $region5: #{tpu_custom_call.1} parent=1 // loop_body
      %s23 = ssub.s32 %s18, 1
      %s24 = ssub.s32 %s18, 2
      %s31 = sadd.s32 1, %s26
      %p32 = scmp.ge.s32.totalorder %s31, 1
      %s33 = scalar_select %p32, 0, %s31
      %s34 = sadd.s32 1, %s25
      %s35 = scalar_select %p32, %s34, %s25
      %p36 = scmp.ge.s32.totalorder %s35, 2
      %s37 = scalar_select %p36, 0, %s35
      %s38 = ssub.s32 %s25, %s37
      %s39 = ssub.s32 %s26, %s33
      %s40 = sor.u32 %s38, %s39
      %p41 = scmp.eq.s32.totalorder %s40, 0
      %s43 = sadd.s32 %s42, 1
      %s44 = scalar_select %p41, %s42, %s43
      %p47 = pneg %p41
      %p48 = scmp.eq.s32.totalorder %s18, 1
      %p49 = por %p47, %p48
      %p50 = scmp.ne.s32.totalorder %s42, %s45
      %p51 = scmp.eq.s32.totalorder %s18, 0
      %p52 = por %p50, %p51
      %p53 = scmp.ne.s32.totalorder %s42, %s45
      %p54 = scmp.eq.s32.totalorder %s23, 1
      %p55 = por %p53, %p54
      %p56 = scmp.ne.s32.totalorder %s45, %s46
      %p57 = scmp.eq.s32.totalorder %s23, 0
      %p58 = por %p56, %p57
      %p59 = scmp.ne.s32.totalorder %s45, %s46
      %p60 = scmp.eq.s32.totalorder %s24, 1
      %p61 = por %p59, %p60
      %p63 = scmp.ne.s32.totalorder %s46, %s62
      %p64 = scmp.eq.s32.totalorder %s24, 0
      %p65 = por %p63, %p64
      %s66 = ssub.s32 %s25, %s37
      %p67 = scmp.eq.s32.totalorder %s66, 0
      %s69 = sadd.s32 %s68, 1
      %s70 = scalar_select %p67, %s68, %s69
      %p73 = pneg %p67
      %p74 = scmp.eq.s32.totalorder %s18, 1
      %p75 = por %p73, %p74
      %p76 = scmp.ne.s32.totalorder %s68, %s71
      %p77 = scmp.eq.s32.totalorder %s18, 0
      %p78 = por %p76, %p77
      %p79 = scmp.ne.s32.totalorder %s68, %s71
      %p80 = scmp.eq.s32.totalorder %s23, 1
      %p81 = por %p79, %p80
      %p82 = scmp.ne.s32.totalorder %s71, %s72
      %p83 = scmp.eq.s32.totalorder %s23, 0
      %p84 = por %p82, %p83
      %p85 = scmp.ne.s32.totalorder %s71, %s72
      %p86 = scmp.eq.s32.totalorder %s24, 1
      %p87 = por %p85, %p86
      %p89 = scmp.ne.s32.totalorder %s72, %s88
      %p90 = scmp.eq.s32.totalorder %s24, 0
      %p91 = por %p89, %p90
      %s92 = ssub.s32 %s25, %s37
      %p93 = scmp.eq.s32.totalorder %s92, 0
      %s95 = sadd.s32 %s94, 1
      %s96 = scalar_select %p93, %s94, %s95
      %p99 = pneg %p93
      %p100 = scmp.eq.s32.totalorder %s18, 1
      %p101 = por %p99, %p100
      %p102 = scmp.ne.s32.totalorder %s94, %s97
      %p103 = scmp.eq.s32.totalorder %s18, 0
      %p104 = por %p102, %p103
      %p105 = scmp.ne.s32.totalorder %s94, %s97
      %p106 = scmp.eq.s32.totalorder %s23, 1
      %p107 = por %p105, %p106
      %p108 = scmp.ne.s32.totalorder %s97, %s98
      %p109 = scmp.eq.s32.totalorder %s23, 0
      %p110 = por %p108, %p109
      %p111 = scmp.ne.s32.totalorder %s97, %s98
      %p112 = scmp.eq.s32.totalorder %s24, 1
      %p113 = por %p111, %p112
      %p115 = scmp.ne.s32.totalorder %s98, %s114
      %p116 = scmp.eq.s32.totalorder %s24, 0
      %p117 = por %p115, %p116
      %s118 = ssub.s32 %s25, %s37
      %s119 = ssub.s32 %s26, %s33
      %s120 = sor.u32 %s118, %s119
      %p121 = scmp.eq.s32.totalorder %s120, 0
      %s123 = sadd.s32 %s122, 1
      %s124 = scalar_select %p121, %s122, %s123
      %p127 = pneg %p121
      %p128 = scmp.eq.s32.totalorder %s18, 1
      %p129 = por %p127, %p128
      %p130 = scmp.ne.s32.totalorder %s122, %s125
      %p131 = scmp.eq.s32.totalorder %s18, 0
      %p132 = por %p130, %p131
      %p133 = scmp.ne.s32.totalorder %s122, %s125
      %p134 = scmp.eq.s32.totalorder %s23, 1
      %p135 = por %p133, %p134
      %p136 = scmp.ne.s32.totalorder %s125, %s126
      %p137 = scmp.eq.s32.totalorder %s23, 0
      %p138 = por %p136, %p137
      %p139 = scmp.ne.s32.totalorder %s125, %s126
      %p140 = scmp.eq.s32.totalorder %s24, 1
      %p141 = por %p139, %p140
      %p143 = scmp.ne.s32.totalorder %s126, %s142
      %p144 = scmp.eq.s32.totalorder %s24, 0
      %p145 = por %p143, %p144
      %s146 = ssub.s32 %s25, %s37
      %s147 = ssub.s32 %s26, %s33
      %s148 = sor.u32 %s146, %s147
      %p149 = scmp.eq.s32.totalorder %s148, 0
      %s151 = sadd.s32 %s150, 1
      %s152 = scalar_select %p149, %s150, %s151
      %p155 = pneg %p149
      %p156 = scmp.eq.s32.totalorder %s18, 1
      %p157 = por %p155, %p156
      %p158 = scmp.ne.s32.totalorder %s150, %s153
      %p159 = scmp.eq.s32.totalorder %s18, 0
      %p160 = por %p158, %p159
      %p161 = scmp.ne.s32.totalorder %s150, %s153
      %p162 = scmp.eq.s32.totalorder %s23, 1
      %p163 = por %p161, %p162
      %p164 = scmp.ne.s32.totalorder %s153, %s154
      %p165 = scmp.eq.s32.totalorder %s23, 0
      %p166 = por %p164, %p165
      %p167 = scmp.ne.s32.totalorder %s153, %s154
      %p168 = scmp.eq.s32.totalorder %s24, 1
      %p169 = por %p167, %p168
      %p171 = scmp.ne.s32.totalorder %s154, %s170
      %p172 = scmp.eq.s32.totalorder %s24, 0
      %p173 = por %p171, %p172
      %s174 = ssub.s32 %s25, %s37
      %s175 = ssub.s32 %s26, %s33
      %s176 = sor.u32 %s174, %s175
      %p177 = scmp.eq.s32.totalorder %s176, 0
      %s179 = sadd.s32 %s178, 1
      %s180 = scalar_select %p177, %s178, %s179
      %p183 = pneg %p177
      %p184 = scmp.eq.s32.totalorder %s18, 1
      %p185 = por %p183, %p184
      %p186 = scmp.ne.s32.totalorder %s178, %s181
      %p187 = scmp.eq.s32.totalorder %s18, 0
      %p188 = por %p186, %p187
      %p189 = scmp.ne.s32.totalorder %s178, %s181
      %p190 = scmp.eq.s32.totalorder %s23, 1
      %p191 = por %p189, %p190
      %p192 = scmp.ne.s32.totalorder %s181, %s182
      %p193 = scmp.eq.s32.totalorder %s23, 0
      %p194 = por %p192, %p193
      %p195 = scmp.ne.s32.totalorder %s181, %s182
      %p196 = scmp.eq.s32.totalorder %s24, 1
      %p197 = por %p195, %p196
      %p199 = scmp.ne.s32.totalorder %s182, %s198
      %p200 = scmp.eq.s32.totalorder %s24, 0
      %p201 = por %p199, %p200
      %p202 = scmp.le.s32.totalorder 1, %s18
      %p203 = scmp.lt.s32.totalorder %s18, 3
      %p204 = pnand %p202, %p203
      %p205 = pneg %p204
      // Predicated region
      $region9: #{tpu_custom_call.1} parent=5 // pred_check
        _
      $region10: #{tpu_custom_call.1} parent=5 // pred_check_branch
        %207 = sbr.rel (%p204) target = $region12
      $region11: #{tpu_custom_call.1} parent=5 // pred_region
        %s208 = ssub.s32 %s18, 1
      $region12: #{tpu_custom_call.1} parent=5 // pred_fallthru
        _
      %p209 = scmp.lt.s32.totalorder %s18, 2
      // Predicated region
      $region13: #{tpu_custom_call.1} parent=5 // pred_check
        %p210 = pneg %p209
      $region14: #{tpu_custom_call.1} parent=5 // pred_check_branch
        %212 = sbr.rel (%p210) target = $region16
      $region15: #{tpu_custom_call.1} parent=5 // pred_region
        // Predicated region
        $region17: #{tpu_custom_call.1} parent=15 // pred_check
          %p213 = pneg %p52
        $region18: #{tpu_custom_call.1} parent=15 // pred_check_branch
          %215 = sbr.rel (%p213) target = $region20
        $region19: #{tpu_custom_call.1} parent=15 // pred_region
          %p216 = scmp.lt.s32.totalorder %s25, 1
          %s217 = scalar_select %p216, %s25, 1
          %p218 = scmp.lt.s32.totalorder %s26, 0
          %s219 = scalar_select %p218, %s26, 0
          %s220 = sadd.s32 %s219, %s217
          %s221 = smul.addr %s220, 8
          %s222 = scalar_lea.vmem %s0, %s221
        $region20: #{tpu_custom_call.1} parent=15 // pred_fallthru
          _
        // Predicated region
        $region21: #{tpu_custom_call.1} parent=15 // pred_check
          %p223 = pneg %p78
        $region22: #{tpu_custom_call.1} parent=15 // pred_check_branch
          %225 = sbr.rel (%p223) target = $region24
        $region23: #{tpu_custom_call.1} parent=15 // pred_region
          %p226 = scmp.lt.s32.totalorder %s25, 1
          %s227 = scalar_select %p226, %s25, 1
          %s228 = smul.addr %s227, 4
          %s229 = smul.addr %s228, 8
          %s230 = scalar_lea.vmem %s1, %s229
        $region24: #{tpu_custom_call.1} parent=15 // pred_fallthru
          _
        // Predicated region
        $region25: #{tpu_custom_call.1} parent=15 // pred_check
          %p231 = pneg %p104
        $region26: #{tpu_custom_call.1} parent=15 // pred_check_branch
          %233 = sbr.rel (%p231) target = $region28
        $region27: #{tpu_custom_call.1} parent=15 // pred_region
          %p234 = scmp.lt.s32.totalorder %s25, 1
          %s235 = scalar_select %p234, %s25, 1
          %s236 = smul.addr %s235, 8
          %s237 = scalar_lea.vmem %s2, %s236
        $region28: #{tpu_custom_call.1} parent=15 // pred_fallthru
          _
      $region16: #{tpu_custom_call.1} parent=5 // pred_fallthru
        _
      %p238 = scmp.le.s32.totalorder 1, %s18
      %p239 = scmp.lt.s32.totalorder %s18, 3
      %p240 = pnand %p238, %p239
      %p241 = pneg %p240
      // Predicated region
      $region29: #{tpu_custom_call.1} parent=5 // pred_check
        _
      $region30: #{tpu_custom_call.1} parent=5 // pred_check_branch
        %243 = sbr.rel (%p240) target = $region32
      $region31: #{tpu_custom_call.1} parent=5 // pred_region
        %s244 = ssub.s32 %s18, 1
        %p245 = scmp.lt.s32.totalorder %s27, 1
        %s246 = scalar_select %p245, %s27, 1
        %p247 = scmp.lt.s32.totalorder %s28, 0
        %s248 = scalar_select %p247, %s28, 0
        %s249 = sadd.s32 %s248, %s246
        %s250 = smul.addr %s249, 8
        %s251 = scalar_lea.vmem %s0, %s250
        %p252 = pneg %p58
        %p253 = pneg %p55
        %p254 = scmp.lt.s32.totalorder %s27, 1
        %s255 = scalar_select %p254, %s27, 1
        %s256 = smul.addr %s255, 4
        %s257 = smul.addr %s256, 8
        %s258 = scalar_lea.vmem %s1, %s257
        %p259 = pneg %p84
        %p260 = pneg %p81
        %p261 = scmp.lt.s32.totalorder %s27, 1
        %s262 = scalar_select %p261, %s27, 1
        %s263 = smul.addr %s262, 8
        %s264 = scalar_lea.vmem %s2, %s263
        %p265 = pneg %p110
        %p266 = pneg %p107
        %p267 = pneg %p138
        %p268 = pneg %p135
        %s269 = sand.u32 %s125, 1
        %s270 = scalar_lea.sflag [#allocation3], %s269
        %s271 = sand.u32 %s125, 1
        %s272 = smul.addr %s271, 8
        %s273 = scalar_lea.vmem [#allocation2], %s272
        %p274 = pneg %p166
        %p275 = pneg %p163
        %s276 = sand.u32 %s23, 1
        %s277 = scalar_lea.sflag [#allocation5], %s276
        %s278 = sand.u32 %s153, 1
        %s279 = smul.addr %s278, 8
        %s280 = scalar_lea.vmem [#allocation4], %s279
        %p281 = pneg %p194
        %p282 = pneg %p191
        %s283 = sand.u32 %s23, 1
        %s284 = scalar_lea.sflag [#allocation5], %s283
        %s285 = sand.u32 %s181, 1
        %s286 = smul.addr %s285, 8
        %s287 = scalar_lea.vmem [#allocation6], %s286
        %p288 = scmp.lt.s32.totalorder %s27, 1
        %s289 = scalar_select %p288, %s27, 1
        %p290 = scmp.lt.s32.totalorder %s28, 0
        %s291 = scalar_select %p290, %s28, 0
        %s292 = sadd.s32 %s291, %s289
        %s293 = smul.addr %s292, 8
        %s294 = scalar_lea.vmem %s0, %s293
        %p295 = scmp.lt.s32.totalorder %s27, 1
        %s296 = scalar_select %p295, %s27, 1
        %s297 = smul.addr %s296, 4
        %s298 = smul.addr %s297, 8
        %s299 = scalar_lea.vmem %s1, %s298
        %p300 = scmp.lt.s32.totalorder %s27, 1
        %s301 = scalar_select %p300, %s27, 1
        %s302 = smul.addr %s301, 8
        %s303 = scalar_lea.vmem %s2, %s302
        %v304 = vld [vmem:[%s294] sm:$0xff]
        %v305 = vmul.f32 %v304, 0.17677669
        %v306 = vld [vmem:[%s299] sm:$0xff]
        %v307 = vld [vmem:[%s299 + $0x8] sm:$0xff]
        %v308 = vld [vmem:[%s299 + $0x10] sm:$0xff]
        %v309 = vld [vmem:[%s299 + $0x18] sm:$0xff]
        %v310 = vld [vmem:[%s303] sm:$0xff]
        %vm311 = vcmask 261120
        %v313 = vsel %vm311, %v305, 0
        %315 = vmatprep.subr.mxu0 0.0
        %316 = vmatpush1.msra.mxu0 %v306
        %317 = vmatprep.subr.mxu0 0.0
        %318 = vmatpush1.msra.mxu0 %v307
        %319 = vmatprep.subr.mxu0 0.0
        %320 = vmatpush1.msra.mxu0 %v308
        %321 = vmatprep.subr.mxu0 0.0
        %322 = vmatpush1.msra.mxu0 %v309
        %323 = vmatprep.subr.mxu0 0.0
        %324 = vmatpush1.msra.mxu0 0.0
        %325 = vmatprep.subr.mxu0 0.0
        %326 = vmatpush1.msra.mxu0 0.0
        %327 = vmatprep.subr.mxu0 0.0
        %328 = vmatpush1.msra.mxu0 0.0
        %329 = vmatprep.subr.mxu0 0.0
        %330 = vmatpush1.msra.mxu0 0.0
        %331 = vmatprep.subr.mxu0 0.0
        %332 = vmatpush1.msra.mxu0 0.0
        %333 = vmatprep.subr.mxu0 0.0
        %334 = vmatpush1.msra.mxu0 0.0
        %335 = vmatprep.subr.mxu0 0.0
        %336 = vmatpush1.msra.mxu0 0.0
        %337 = vmatprep.subr.mxu0 0.0
        %338 = vmatpush1.msra.mxu0 0.0
        %339 = vmatprep.subr.mxu0 0.0
        %340 = vmatpush1.msra.mxu0 0.0
        %341 = vmatprep.subr.mxu0 0.0
        %342 = vmatpush1.msra.mxu0 0.0
        %343 = vmatprep.subr.mxu0 0.0
        %344 = vmatpush1.msra.mxu0 0.0
        %345 = vmatprep.subr.mxu0 0.0
        %346 = vmatpush1.msra.mxu0 0.0
        %347 = vmatprep.subr.mxu0 0.0
        %348 = vmatpush1.msra.mxu0 0.0
        %349 = vmatprep.subr.mxu0 0.0
        %350 = vmatpush1.msra.mxu0 0.0
        %351 = vmatprep.subr.mxu0 0.0
        %352 = vmatpush1.msra.mxu0 0.0
        %353 = vmatprep.subr.mxu0 0.0
        %354 = vmatpush1.msra.mxu0 0.0
        %355 = vmatprep.subr.mxu0 0.0
        %356 = vmatpush1.msra.mxu0 0.0
        %357 = vmatprep.subr.mxu0 0.0
        %358 = vmatpush1.msra.mxu0 0.0
        %359 = vmatprep.subr.mxu0 0.0
        %360 = vmatpush1.msra.mxu0 0.0
        %361 = vmatprep.subr.mxu0 0.0
        %362 = vmatpush1.msra.mxu0 0.0
        %363 = vmatprep.subr.mxu0 0.0
        %364 = vmatpush1.msra.mxu0 0.0
        %365 = vmatprep.subr.mxu0 0.0
        %366 = vmatpush1.msra.mxu0 0.0
        %367 = vmatprep.subr.mxu0 0.0
        %368 = vmatpush1.msra.mxu0 0.0
        %369 = vmatprep.subr.mxu0 0.0
        %370 = vmatpush1.msra.mxu0 0.0
        %371 = vmatprep.subr.mxu0 0.0
        %372 = vmatpush1.msra.mxu0 0.0
        %373 = vmatprep.subr.mxu0 0.0
        %374 = vmatpush1.msra.mxu0 0.0
        %375 = vmatprep.subr.mxu0 0.0
        %376 = vmatpush1.msra.mxu0 0.0
        %377 = vmatprep.subr.mxu0 0.0
        %378 = vmatpush1.msra.mxu0 0.0
        %379 = vmatprep.mubr.f32.mxu0 0.0
        %380 = vmatmul.mubr.f32.gmra.mrb[0].mxu0 %v313
        %v381 = vpop.f32.mrb[0].mxu0
        %v382 = vadd.f32 0.0, %v381
        %v383 = vpop.f32.mrb[0].mxu0
        %384 = vdwg.mxu0
        %vm385 = vcmask 64512
        %v386 = vsel %vm385, %v382, -inf
        %387 = vmax.xlane.f32.xlu0 %v386
        %v388 = vpop.xlane.xlu0 %387
        %v389 = vsub.f32 %v382, %v388
        %v390 = vmul.f32 %v389, 1.442695
        %v391 = vpow.pop %v390
        %v392 = vsel %vm385, %v391, 0.0
        %393 = vadd.xlane.f32.xlu0 %v392
        %v394 = vpop.xlane.xlu0 %393
        %v395 = vlog2.pop %v394
        %v396 = vmul.f32 %v395, 0.6931472
        %v397 = vsub.f32 %v389, %v396
        %398 = vst.msk [vmem:[%s287] sm:$0xff] %vm385, %v397
        %v399 = vrcp.pop %v394
        %v400 = vmul.f32 %v391, %v399
        %401 = vst.msk [vmem:[%s280] sm:$0xff] %vm385, %v400
        %v403 = vsel %vm385, %v400, 0
        %405 = vmatprep.subr.mxu0 0.0
        %406 = vmatpush1.msra.mxu0 %v310
        %407 = vmatprep.subr.mxu0 0.0
        %408 = vmatpush1.msra.mxu0 0.0
        %409 = vmatprep.subr.mxu0 0.0
        %410 = vmatpush1.msra.mxu0 0.0
        %411 = vmatprep.subr.mxu0 0.0
        %412 = vmatpush1.msra.mxu0 0.0
        %413 = vmatprep.subr.mxu0 0.0
        %414 = vmatpush1.msra.mxu0 0.0
        %415 = vmatprep.subr.mxu0 0.0
        %416 = vmatpush1.msra.mxu0 0.0
        %417 = vmatprep.subr.mxu0 0.0
        %418 = vmatpush1.msra.mxu0 0.0
        %419 = vmatprep.subr.mxu0 0.0
        %420 = vmatpush1.msra.mxu0 0.0
        %421 = vmatprep.subr.mxu0 0.0
        %422 = vmatpush1.msra.mxu0 0.0
        %423 = vmatprep.subr.mxu0 0.0
        %424 = vmatpush1.msra.mxu0 0.0
        %425 = vmatprep.subr.mxu0 0.0
        %426 = vmatpush1.msra.mxu0 0.0
        %427 = vmatprep.subr.mxu0 0.0
        %428 = vmatpush1.msra.mxu0 0.0
        %429 = vmatprep.subr.mxu0 0.0
        %430 = vmatpush1.msra.mxu0 0.0
        %431 = vmatprep.subr.mxu0 0.0
        %432 = vmatpush1.msra.mxu0 0.0
        %433 = vmatprep.subr.mxu0 0.0
        %434 = vmatpush1.msra.mxu0 0.0
        %435 = vmatprep.subr.mxu0 0.0
        %436 = vmatpush1.msra.mxu0 0.0
        %437 = vmatprep.subr.mxu0 0.0
        %438 = vmatpush1.msra.mxu0 0.0
        %439 = vmatprep.subr.mxu0 0.0
        %440 = vmatpush1.msra.mxu0 0.0
        %441 = vmatprep.subr.mxu0 0.0
        %442 = vmatpush1.msra.mxu0 0.0
        %443 = vmatprep.subr.mxu0 0.0
        %444 = vmatpush1.msra.mxu0 0.0
        %445 = vmatprep.subr.mxu0 0.0
        %446 = vmatpush1.msra.mxu0 0.0
        %447 = vmatprep.subr.mxu0 0.0
        %448 = vmatpush1.msra.mxu0 0.0
        %449 = vmatprep.subr.mxu0 0.0
        %450 = vmatpush1.msra.mxu0 0.0
        %451 = vmatprep.subr.mxu0 0.0
        %452 = vmatpush1.msra.mxu0 0.0
        %453 = vmatprep.subr.mxu0 0.0
        %454 = vmatpush1.msra.mxu0 0.0
        %455 = vmatprep.subr.mxu0 0.0
        %456 = vmatpush1.msra.mxu0 0.0
        %457 = vmatprep.subr.mxu0 0.0
        %458 = vmatpush1.msra.mxu0 0.0
        %459 = vmatprep.subr.mxu0 0.0
        %460 = vmatpush1.msra.mxu0 0.0
        %461 = vmatprep.subr.mxu0 0.0
        %462 = vmatpush1.msra.mxu0 0.0
        %463 = vmatprep.subr.mxu0 0.0
        %464 = vmatpush1.msra.mxu0 0.0
        %465 = vmatprep.subr.mxu0 0.0
        %466 = vmatpush1.msra.mxu0 0.0
        %467 = vmatprep.subr.mxu0 0.0
        %468 = vmatpush1.msra.mxu0 0.0
        %469 = vmatprep.mubr.f32.mxu0 0.0
        %470 = vmatmul.mubr.f32.gmra.mrb[0].mxu0 %v403
        %v471 = vpop.f32.mrb[0].mxu0
        %v472 = vadd.f32 0.0, %v471
        %v473 = vpop.f32.mrb[0].mxu0
        %474 = vdwg.mxu0
        %475 = vst.msk [vmem:[%s273] sm:$0xff] %vm311, %v472
        %s476 = sand.u32 %s125, 1
        %s477 = scalar_lea.sflag [#allocation3], %s476
        %s478 = sand.u32 %s125, 1
        %s479 = smul.addr %s478, 8
        %s480 = scalar_lea.vmem [#allocation2], %s479
        %s481 = sand.u32 %s23, 1
        %s482 = scalar_lea.sflag [#allocation5], %s481
        %s483 = sand.u32 %s153, 1
        %s484 = smul.addr %s483, 8
        %s485 = scalar_lea.vmem [#allocation4], %s484
        %s486 = sand.u32 %s23, 1
        %s487 = scalar_lea.sflag [#allocation5], %s486
        %s488 = sand.u32 %s181, 1
        %s489 = smul.addr %s488, 8
        %s490 = scalar_lea.vmem [#allocation6], %s489
        // Predicated region
        $region33: #{tpu_custom_call.1} parent=31 // pred_check
          %p491 = pneg %p135
        $region34: #{tpu_custom_call.1} parent=31 // pred_check_branch
          %493 = sbr.rel (%p491) target = $region36
        $region35: #{tpu_custom_call.1} parent=31 // pred_region
          %s495 = ssub.s32 128, 128
          %496 = vsyncadd %s477, %s495
          %s497 = sadd.s32 %s28, %s27
          %s498 = smul.addr %s497, 128
          %s499 = scalar_lea.hbm %s3, %s498
          %s501 = sshll.u32 %s480, 4
          %s502 = int_to_ptr.vmem [resolvable:$true] %s501
          %504 = dma.vmem_to_hbm [thread:$0]  %s502, 128, %s499, %s477
        $region36: #{tpu_custom_call.1} parent=31 // pred_fallthru
          _
        // Predicated region
        $region37: #{tpu_custom_call.1} parent=31 // pred_check
          %p505 = pneg %p163
        $region38: #{tpu_custom_call.1} parent=31 // pred_check_branch
          %507 = sbr.rel (%p505) target = $region40
        $region39: #{tpu_custom_call.1} parent=31 // pred_region
          %s509 = ssub.s32 128, 128
          %510 = vsyncadd %s482, %s509
          %s511 = sadd.s32 %s28, %s27
          %s512 = smul.addr %s511, 128
          %s513 = scalar_lea.hbm %s4, %s512
          %s515 = sshll.u32 %s485, 4
          %s516 = int_to_ptr.vmem [resolvable:$true] %s515
          %518 = dma.vmem_to_hbm [thread:$0]  %s516, 128, %s513, %s482
        $region40: #{tpu_custom_call.1} parent=31 // pred_fallthru
          _
        // Predicated region
        $region41: #{tpu_custom_call.1} parent=31 // pred_check
          %p519 = pneg %p191
        $region42: #{tpu_custom_call.1} parent=31 // pred_check_branch
          %521 = sbr.rel (%p519) target = $region44
        $region43: #{tpu_custom_call.1} parent=31 // pred_region
          %s523 = ssub.s32 128, 128
          %524 = vsyncadd %s487, %s523
          %s525 = sadd.s32 %s28, %s27
          %s526 = smul.addr %s525, 128
          %s527 = scalar_lea.hbm %s5, %s526
          %s529 = sshll.u32 %s490, 4
          %s530 = int_to_ptr.vmem [resolvable:$true] %s529
          %532 = dma.vmem_to_hbm [thread:$0]  %s530, 128, %s527, %s487
        $region44: #{tpu_custom_call.1} parent=31 // pred_fallthru
          _
      $region32: #{tpu_custom_call.1} parent=5 // pred_fallthru
        _
      %p533 = scmp.le.s32.totalorder 2, %s18
      // Predicated region
      $region45: #{tpu_custom_call.1} parent=5 // pred_check
        %p534 = pneg %p533
      $region46: #{tpu_custom_call.1} parent=5 // pred_check_branch
        %536 = sbr.rel (%p534) target = $region48
      $region47: #{tpu_custom_call.1} parent=5 // pred_region
        %s537 = ssub.s32 %s18, 2
        // Predicated region
        $region49: #{tpu_custom_call.1} parent=47 // pred_check
          %p538 = pneg %p141
        $region50: #{tpu_custom_call.1} parent=47 // pred_check_branch
          %540 = sbr.rel (%p538) target = $region52
        $region51: #{tpu_custom_call.1} parent=47 // pred_region
          %s541 = sand.u32 %s126, 1
          %s542 = scalar_lea.sflag [#allocation3], %s541
          %s543 = sand.u32 %s126, 1
          %s544 = smul.addr %s543, 8
          %s545 = scalar_lea.vmem [#allocation2], %s544
          %546 = dma.done %s542, 128
        $region52: #{tpu_custom_call.1} parent=47 // pred_fallthru
          _
        // Predicated region
        $region53: #{tpu_custom_call.1} parent=47 // pred_check
          %p547 = pneg %p169
        $region54: #{tpu_custom_call.1} parent=47 // pred_check_branch
          %549 = sbr.rel (%p547) target = $region56
        $region55: #{tpu_custom_call.1} parent=47 // pred_region
          %s550 = sand.u32 %s24, 1
          %s551 = scalar_lea.sflag [#allocation5], %s550
          %s552 = sand.u32 %s154, 1
          %s553 = smul.addr %s552, 8
          %s554 = scalar_lea.vmem [#allocation4], %s553
          %555 = dma.done %s551, 128
        $region56: #{tpu_custom_call.1} parent=47 // pred_fallthru
          _
        // Predicated region
        $region57: #{tpu_custom_call.1} parent=47 // pred_check
          %p556 = pneg %p197
        $region58: #{tpu_custom_call.1} parent=47 // pred_check_branch
          %558 = sbr.rel (%p556) target = $region60
        $region59: #{tpu_custom_call.1} parent=47 // pred_region
          %s559 = sand.u32 %s24, 1
          %s560 = scalar_lea.sflag [#allocation5], %s559
          %s561 = sand.u32 %s182, 1
          %s562 = smul.addr %s561, 8
          %s563 = scalar_lea.vmem [#allocation6], %s562
          %564 = dma.done %s560, 128
        $region60: #{tpu_custom_call.1} parent=47 // pred_fallthru
          _
      $region48: #{tpu_custom_call.1} parent=5 // pred_fallthru
        _
    $region6: #{tpu_custom_call.1} parent=1 // loop_footer
      %s22 = sadd.s32 1, %s18
    $region7: #{tpu_custom_call.1} parent=1 // loop_footer_branch
      %17 = sbr.rel target = $region3
    $region8: #{tpu_custom_call.1} parent=1 // loop_exit
      _
    %565 = vsyncpa [#allocation3], 1
    %s566 = scalar_lea.sflag [#allocation3], 1
    %567 = vsyncpa %s566, 1
    %568 = vsyncpa [#allocation5], 1
    %s569 = scalar_lea.sflag [#allocation5], 1
    %570 = vsyncpa %s569, 1

</llo_original>
